<compile_context>
chip_gen: v7x
topology: tpu7x:2x2x1
jax: 0.10.0
libtpu: 0.0.40
codegen_flags: <defaults>
</compile_context>

<pallas_src>
import jax
import jax.numpy as jnp
from jax import lax
from jax.experimental import pallas as pl
from jax.experimental.pallas import tpu as pltpu

# ---- MagLoss hyper-parameters (from __init__) ---------------------------------
L_A = 10.0
U_A = 110.0
L_MARGIN = 0.45
U_MARGIN = 0.8
SCALE = 64.0  # not used in forward(); kept for parity with the module
# cut_off / large_value are computed in __init__ but unused in forward().

# Production tile sizes: TILE_B multiple of 8, TILE_C multiple of 128 (lane-dense
# -> unmasked vector stores). 256 x 1024 f32 = 1 MiB per array tile.
DEFAULT_TILE_B = 256
DEFAULT_TILE_C = 1024


def _magloss_kernel(tgt_ref, cos_ref, cosm_ref, out_ref, *maybe_onehot_ref):
    """One (TILE_B, TILE_C) tile: select cos_theta_m at the target column."""
    tb, tc = cos_ref.shape
    col0 = pl.program_id(1) * tc  # global column offset of this class tile
    col_ids = lax.broadcasted_iota(jnp.int32, (tb, tc), 1) + col0
    is_tgt = col_ids == tgt_ref[...]  # tgt_ref: (tb, 1) int32, broadcasts over lanes

    # output = one_hot * cos_theta_m + (1 - one_hot) * cos_theta  ==  select
    out_ref[...] = jnp.where(is_tgt, cosm_ref[...], cos_ref[...])

    if maybe_onehot_ref:  # only materialize the float one_hot if it is an output
        maybe_onehot_ref[0][...] = is_tgt.astype(maybe_onehot_ref[0].dtype)


def magloss_forward(cos_theta, cos_theta_m, target, x_norm,
                    *, return_one_hot=True,
                    tile_b=DEFAULT_TILE_B, tile_c=DEFAULT_TILE_C):
    """Forward of MagLoss. target: int [B]; x_norm: float [B] or [B,1].

    Returns (output, loss_g, one_hot). one_hot is None if return_one_hot=False
    (saves half the HBM store traffic of the kernel).
    """
    B, C = cos_theta.shape
    tgt = target.reshape(B, 1).astype(jnp.int32)

    # loss_g = mean(x_norm / u_a^2 + 1 / x_norm): O(B) work, hoisted out of the kernel.
    xn = x_norm.reshape(-1).astype(jnp.float32)
    loss_g = jnp.mean(xn * (1.0 / (U_A * U_A)) + 1.0 / xn)

    # Clamp tiles to the array extents (full-dim blocks are always legal); otherwise
    # keep tile_b a multiple of 8 and tile_c a multiple of 128.
    tb = B if B <= tile_b else tile_b
    tc = C if C <= tile_c else tile_c

    grid = (pl.cdiv(B, tb), pl.cdiv(C, tc))
    bc_spec = pl.BlockSpec((tb, tc), lambda i, j: (i, j))
    tgt_spec = pl.BlockSpec((tb, 1), lambda i, j: (i, 0))

    out_shapes = [jax.ShapeDtypeStruct((B, C), cos_theta.dtype)]
    out_specs = [bc_spec]
    if return_one_hot:
        out_shapes.append(jax.ShapeDtypeStruct((B, C), cos_theta.dtype))
        out_specs.append(bc_spec)

    results = pl.pallas_call(
        _magloss_kernel,
        out_shape=tuple(out_shapes),
        grid=grid,
        in_specs=[tgt_spec, bc_spec, bc_spec],
        out_specs=tuple(out_specs),
        compiler_params=pltpu.CompilerParams(
            dimension_semantics=("parallel", "parallel")),
    )(tgt, cos_theta, cos_theta_m)

    if return_one_hot:
        output, one_hot = results
        return output, loss_g, one_hot
    (output,) = results
    return output, loss_g, None


def magloss_reference(cos_theta, cos_theta_m, target, x_norm):
    C = cos_theta.shape[1]
    one_hot = jax.nn.one_hot(target, C, dtype=cos_theta.dtype)
    output = one_hot * cos_theta_m + (1.0 - one_hot) * cos_theta
    xn = x_norm.reshape(-1).astype(jnp.float32)
    loss_g = jnp.mean(xn / (U_A * U_A) + 1.0 / xn)
    return output, loss_g, one_hot


if __name__ == "__main__":
    # Small shapes (batch=16, classes=384); force tiny 8x128 tiles so the demo
    # exercises a real multi-tile 2x3 grid including the column-offset logic.
    B, C = 16, 384
    key = jax.random.PRNGKey(0)
    k1, k2, k3, k4 = jax.random.split(key, 4)

    cos_theta = jax.random.uniform(k1, (B, C), jnp.float32, -1.0, 1.0)
    cos_theta_m = jax.random.uniform(k2, (B, C), jnp.float32, -1.0, 1.0)
    target = jax.random.randint(k3, (B,), 0, C, jnp.int32)
    x_norm = jax.random.uniform(k4, (B,), jnp.float32, L_A, U_A)

    out_ref, loss_ref, oh_ref = magloss_reference(cos_theta, cos_theta_m, target, x_norm)

    # Multi-tile grid (2 x 3) with small tiles.
    out, loss_g, one_hot = magloss_forward(
        cos_theta, cos_theta_m, target, x_norm, tile_b=8, tile_c=128)
    jax.block_until_ready((out, loss_g, one_hot))
    assert jnp.allclose(out, out_ref, atol=1e-5, rtol=1e-5)
    assert jnp.allclose(one_hot, oh_ref, atol=1e-6)
    assert jnp.allclose(loss_g, loss_ref, atol=1e-5, rtol=1e-5)

    # Default production tiles (clamped to the array -> single grid point here).
    out2, loss_g2, one_hot2 = magloss_forward(cos_theta, cos_theta_m, target, x_norm)
    jax.block_until_ready((out2, loss_g2, one_hot2))
    assert jnp.allclose(out2, out_ref, atol=1e-5, rtol=1e-5)
    assert jnp.allclose(one_hot2, oh_ref, atol=1e-6)

    # Store-traffic-saving path: skip the one_hot writeback.
    out3, loss_g3, none_oh = magloss_forward(
        cos_theta, cos_theta_m, target, x_norm, return_one_hot=False,
        tile_b=8, tile_c=128)
    jax.block_until_ready((out3, loss_g3))
    assert none_oh is None
    assert jnp.allclose(out3, out_ref, atol=1e-5, rtol=1e-5)

    print("KERNEL_OK")
</pallas_src>

<mosaic_0001>
module attributes {stable_mosaic.version = 11 : i64} {
  func.func @_magloss_kernel(%arg0: i32, %arg1: i32, %arg2: memref<8x1xi32, #tpu.memory_space<vmem>>, %arg3: memref<8x128xf32, #tpu.memory_space<vmem>>, %arg4: memref<8x128xf32, #tpu.memory_space<vmem>>, %arg5: memref<8x128xf32, #tpu.memory_space<vmem>>, %arg6: memref<8x128xf32, #tpu.memory_space<vmem>>) attributes {dimension_semantics = [#tpu.dimension_semantics<parallel>, #tpu.dimension_semantics<parallel>], iteration_bounds = array<i64: 2, 3>, scalar_prefetch = 0 : i64, scratch_operands = 0 : i64, tpu.core_type = #tpu.core_type<tc>, window_params = [{transform_indices = @transform_0, window_bounds = array<i64: 8, 1>}, {transform_indices = @transform_1, window_bounds = array<i64: 8, 128>}, {transform_indices = @transform_2, window_bounds = array<i64: 8, 128>}, {transform_indices = @transform_3, window_bounds = array<i64: 8, 128>}, {transform_indices = @transform_4, window_bounds = array<i64: 8, 128>}]} {
    %c128_i32 = arith.constant 128 : i32
    %0 = arith.muli %arg1, %c128_i32 : i32
    %1 = tpu.iota {dimensions = array<i32: 1>} : vector<8x128xi32>
    %2 = vector.broadcast %0 : i32 to vector<8x128xi32>
    %3 = arith.addi %1, %2 : vector<8x128xi32>
    %c0 = arith.constant 0 : index
    %c0_0 = arith.constant 0 : index
    %4 = vector.load %arg2[%c0, %c0_0] : memref<8x1xi32, #tpu.memory_space<vmem>>, vector<8x1xi32>
    %5 = vector.broadcast %4 : vector<8x1xi32> to vector<8x128xi32>
    %6 = arith.cmpi eq, %3, %5 : vector<8x128xi32>
    %c0_1 = arith.constant 0 : index
    %c0_2 = arith.constant 0 : index
    %7 = vector.load %arg4[%c0_1, %c0_2] : memref<8x128xf32, #tpu.memory_space<vmem>>, vector<8x128xf32>
    %c0_3 = arith.constant 0 : index
    %c0_4 = arith.constant 0 : index
    %8 = vector.load %arg3[%c0_3, %c0_4] : memref<8x128xf32, #tpu.memory_space<vmem>>, vector<8x128xf32>
    %9 = arith.select %6, %7, %8 : vector<8x128xi1>, vector<8x128xf32>
    %c0_5 = arith.constant 0 : index
    %c0_6 = arith.constant 0 : index
    %10 = vector.load %arg5[%c0_5, %c0_6] : memref<8x128xf32, #tpu.memory_space<vmem>>, vector<8x128xf32>
    tpu.vector_store %arg5[%c0_5, %c0_6], %9 {strides = array<i32>} : memref<8x128xf32, #tpu.memory_space<vmem>>, vector<8x128xf32>,
    %11 = arith.extui %6 : vector<8x128xi1> to vector<8x128xi32>
    %12 = arith.sitofp %11 : vector<8x128xi32> to vector<8x128xf32>
    %c0_7 = arith.constant 0 : index
    %c0_8 = arith.constant 0 : index
    %13 = vector.load %arg6[%c0_7, %c0_8] : memref<8x128xf32, #tpu.memory_space<vmem>>, vector<8x128xf32>
    tpu.vector_store %arg6[%c0_7, %c0_8], %12 {strides = array<i32>} : memref<8x128xf32, #tpu.memory_space<vmem>>, vector<8x128xf32>,
    return
  }
  func.func @transform_0(%arg0: i32, %arg1: i32) -> (i32, i32) {
    %c0_i32 = arith.constant 0 : i32
    %c0_i32_0 = arith.constant 0 : i32
    return %arg0, %c0_i32 : i32, i32
  }
  func.func @transform_1(%arg0: i32, %arg1: i32) -> (i32, i32) {
    %c0_i32 = arith.constant 0 : i32
    return %arg0, %arg1 : i32, i32
  }
  func.func @transform_2(%arg0: i32, %arg1: i32) -> (i32, i32) {
    %c0_i32 = arith.constant 0 : i32
    return %arg0, %arg1 : i32, i32
  }
  func.func @transform_3(%arg0: i32, %arg1: i32) -> (i32, i32) {
    %c0_i32 = arith.constant 0 : i32
    return %arg0, %arg1 : i32, i32
  }
  func.func @transform_4(%arg0: i32, %arg1: i32) -> (i32, i32) {
    %c0_i32 = arith.constant 0 : i32
    return %arg0, %arg1 : i32, i32
  }
}

</mosaic_0001>

<llo_original>
// kernel: tpu_custom_call.1
$region0: #{tpu_custom_call.1}
  #allocation0 [shape = 'u32[]', space=smem, size = 0x4, offset = 0x4, fixed_abs, tag = 'smem constant byte address 0x4 - core index']
  #allocation1 [shape = 'u32[144,128]{1,0:T(1,128)}', space=vmem, size = 0x12000, scoped, tag = 'internal scratch']
  %s0 = inlined_call_operand.vmem [shape: s32[16,1], index: 0, kind: input, shape index: {}]
  %s1 = inlined_call_operand.hbm [shape: f32[16,384], index: 1, kind: input, shape index: {}]
  %s2 = inlined_call_operand.hbm [shape: f32[16,384], index: 2, kind: input, shape index: {}]
  %s3 = inlined_call_operand.hbm [shape: f32[16,384], index: 3, kind: output, shape index: {0}]
  %s4 = inlined_call_operand.hbm [shape: f32[16,384], index: 4, kind: output, shape index: {1}]
  %5 = xla_tuple %s3, %s4
  %s6 = sld [smem:[#allocation0]]
  $region61: #{tpu_custom_call.1} parent=0
    _
  %s8 = ssub.s32 1, %s6
  %s9 = scalar_select 0, %s8, %s6
  $region1: #{tpu_custom_call.1} parent=0
    #allocation2 [shape = 'u8[8192]{0}', space=vmem, size = 0x2000, scoped, tag = 'input window, operand 1']
    #allocation3 [shape = 's32[2]{0}', space=sflag, size = 0x8, scoped, tag = 'scoped memory for tpu_custom_call.1']
    #allocation4 [shape = 's32[2]{0}', space=sflag, size = 0x8, scoped, tag = 'scoped memory for tpu_custom_call.1']
    #allocation5 [shape = 'u8[8192]{0}', space=vmem, size = 0x2000, scoped, tag = 'input window, operand 2']
    #allocation6 [shape = 's32[2]{0}', space=sflag, size = 0x8, scoped, tag = 'scoped memory for tpu_custom_call.1']
    #allocation7 [shape = 'u8[8192]{0}', space=vmem, size = 0x2000, scoped, tag = 'output window, operand 0']
    #allocation8 [shape = 'u8[8192]{0}', space=vmem, size = 0x2000, scoped, tag = 'output window, operand 1']
    #allocation9 [shape = 's32[2]{0}', space=sflag, size = 0x8, scoped, tag = 'scoped memory for tpu_custom_call.1']
    %10 = vsyncpa [#allocation3], 0
    %s11 = scalar_lea.sflag [#allocation3], 1
    %12 = vsyncpa %s11, 0
    %13 = vsyncpa [#allocation6], 0
    %s14 = scalar_lea.sflag [#allocation6], 1
    %15 = vsyncpa %s14, 0
    %16 = vsyncpa [#allocation4], 0
    %s17 = scalar_lea.sflag [#allocation4], 1
    %18 = vsyncpa %s17, 0
    %19 = vsyncpa [#allocation9], 0
    %s20 = scalar_lea.sflag [#allocation9], 1
    %21 = vsyncpa %s20, 0
    loop: start=0, step=1, limit=8
    $region2: #{tpu_custom_call.1} parent=1 // loop_pre_header
      _
    $region3: #{tpu_custom_call.1} parent=1 // loop_header
      %s23 = sphi 0, %s27
      %p24 = scmp.ge.s32.totalorder %s23, 8
      %s30 = sphi 0, %s42
      %s31 = sphi 0, %s38
      %s32 = sphi 0, %s30
      %s33 = sphi 0, %s31
      %s34 = sphi 0, %s32
      %s35 = sphi 0, %s33
      %s45 = sphi 0, %s47
      %s48 = sphi 0, %s45
      %s49 = sphi 0, %s48
      %s65 = sphi 0, %s49
      %s73 = sphi 0, %s75
      %s76 = sphi 0, %s73
      %s77 = sphi 0, %s76
      %s93 = sphi 0, %s77
      %s101 = sphi 0, %s103
      %s104 = sphi 0, %s101
      %s105 = sphi 0, %s104
      %s121 = sphi 0, %s105
      %s129 = sphi 0, %s131
      %s132 = sphi 0, %s129
      %s133 = sphi 0, %s132
      %s149 = sphi 0, %s133
      %s157 = sphi 0, %s159
      %s160 = sphi 0, %s157
      %s161 = sphi 0, %s160
      %s177 = sphi 0, %s161
    $region4: #{tpu_custom_call.1} parent=1 // loop_header_branch
      %26 = sbr.rel (%p24) target = $region8
    $region5: #{tpu_custom_call.1} parent=1 // loop_body
      %s28 = ssub.s32 %s23, 1
      %s29 = ssub.s32 %s23, 2
      %s36 = sadd.s32 1, %s31
      %p37 = scmp.ge.s32.totalorder %s36, 3
      %s38 = scalar_select %p37, 0, %s36
      %s39 = sadd.s32 1, %s30
      %s40 = scalar_select %p37, %s39, %s30
      %p41 = scmp.ge.s32.totalorder %s40, 2
      %s42 = scalar_select %p41, 0, %s40
      %s43 = ssub.s32 %s30, %s42
      %p44 = scmp.eq.s32.totalorder %s43, 0
      %s46 = sadd.s32 %s45, 1
      %s47 = scalar_select %p44, %s45, %s46
      %p50 = pneg %p44
      %p51 = scmp.eq.s32.totalorder %s23, 5
      %p52 = por %p50, %p51
      %p53 = scmp.ne.s32.totalorder %s45, %s48
      %p54 = scmp.eq.s32.totalorder %s23, 0
      %p55 = por %p53, %p54
      %p56 = scmp.ne.s32.totalorder %s45, %s48
      %p57 = scmp.eq.s32.totalorder %s28, 5
      %p58 = por %p56, %p57
      %p59 = scmp.ne.s32.totalorder %s48, %s49
      %p60 = scmp.eq.s32.totalorder %s28, 0
      %p61 = por %p59, %p60
      %p62 = scmp.ne.s32.totalorder %s48, %s49
      %p63 = scmp.eq.s32.totalorder %s29, 5
      %p64 = por %p62, %p63
      %p66 = scmp.ne.s32.totalorder %s49, %s65
      %p67 = scmp.eq.s32.totalorder %s29, 0
      %p68 = por %p66, %p67
      %s69 = ssub.s32 %s30, %s42
      %s70 = ssub.s32 %s31, %s38
      %s71 = sor.u32 %s69, %s70
      %p72 = scmp.eq.s32.totalorder %s71, 0
      %s74 = sadd.s32 %s73, 1
      %s75 = scalar_select %p72, %s73, %s74
      %p78 = pneg %p72
      %p79 = scmp.eq.s32.totalorder %s23, 5
      %p80 = por %p78, %p79
      %p81 = scmp.ne.s32.totalorder %s73, %s76
      %p82 = scmp.eq.s32.totalorder %s23, 0
      %p83 = por %p81, %p82
      %p84 = scmp.ne.s32.totalorder %s73, %s76
      %p85 = scmp.eq.s32.totalorder %s28, 5
      %p86 = por %p84, %p85
      %p87 = scmp.ne.s32.totalorder %s76, %s77
      %p88 = scmp.eq.s32.totalorder %s28, 0
      %p89 = por %p87, %p88
      %p90 = scmp.ne.s32.totalorder %s76, %s77
      %p91 = scmp.eq.s32.totalorder %s29, 5
      %p92 = por %p90, %p91
      %p94 = scmp.ne.s32.totalorder %s77, %s93
      %p95 = scmp.eq.s32.totalorder %s29, 0
      %p96 = por %p94, %p95
      %s97 = ssub.s32 %s30, %s42
      %s98 = ssub.s32 %s31, %s38
      %s99 = sor.u32 %s97, %s98
      %p100 = scmp.eq.s32.totalorder %s99, 0
      %s102 = sadd.s32 %s101, 1
      %s103 = scalar_select %p100, %s101, %s102
      %p106 = pneg %p100
      %p107 = scmp.eq.s32.totalorder %s23, 5
      %p108 = por %p106, %p107
      %p109 = scmp.ne.s32.totalorder %s101, %s104
      %p110 = scmp.eq.s32.totalorder %s23, 0
      %p111 = por %p109, %p110
      %p112 = scmp.ne.s32.totalorder %s101, %s104
      %p113 = scmp.eq.s32.totalorder %s28, 5
      %p114 = por %p112, %p113
      %p115 = scmp.ne.s32.totalorder %s104, %s105
      %p116 = scmp.eq.s32.totalorder %s28, 0
      %p117 = por %p115, %p116
      %p118 = scmp.ne.s32.totalorder %s104, %s105
      %p119 = scmp.eq.s32.totalorder %s29, 5
      %p120 = por %p118, %p119
      %p122 = scmp.ne.s32.totalorder %s105, %s121
      %p123 = scmp.eq.s32.totalorder %s29, 0
      %p124 = por %p122, %p123
      %s125 = ssub.s32 %s30, %s42
      %s126 = ssub.s32 %s31, %s38
      %s127 = sor.u32 %s125, %s126
      %p128 = scmp.eq.s32.totalorder %s127, 0
      %s130 = sadd.s32 %s129, 1
      %s131 = scalar_select %p128, %s129, %s130
      %p134 = pneg %p128
      %p135 = scmp.eq.s32.totalorder %s23, 5
      %p136 = por %p134, %p135
      %p137 = scmp.ne.s32.totalorder %s129, %s132
      %p138 = scmp.eq.s32.totalorder %s23, 0
      %p139 = por %p137, %p138
      %p140 = scmp.ne.s32.totalorder %s129, %s132
      %p141 = scmp.eq.s32.totalorder %s28, 5
      %p142 = por %p140, %p141
      %p143 = scmp.ne.s32.totalorder %s132, %s133
      %p144 = scmp.eq.s32.totalorder %s28, 0
      %p145 = por %p143, %p144
      %p146 = scmp.ne.s32.totalorder %s132, %s133
      %p147 = scmp.eq.s32.totalorder %s29, 5
      %p148 = por %p146, %p147
      %p150 = scmp.ne.s32.totalorder %s133, %s149
      %p151 = scmp.eq.s32.totalorder %s29, 0
      %p152 = por %p150, %p151
      %s153 = ssub.s32 %s30, %s42
      %s154 = ssub.s32 %s31, %s38
      %s155 = sor.u32 %s153, %s154
      %p156 = scmp.eq.s32.totalorder %s155, 0
      %s158 = sadd.s32 %s157, 1
      %s159 = scalar_select %p156, %s157, %s158
      %p162 = pneg %p156
      %p163 = scmp.eq.s32.totalorder %s23, 5
      %p164 = por %p162, %p163
      %p165 = scmp.ne.s32.totalorder %s157, %s160
      %p166 = scmp.eq.s32.totalorder %s23, 0
      %p167 = por %p165, %p166
      %p168 = scmp.ne.s32.totalorder %s157, %s160
      %p169 = scmp.eq.s32.totalorder %s28, 5
      %p170 = por %p168, %p169
      %p171 = scmp.ne.s32.totalorder %s160, %s161
      %p172 = scmp.eq.s32.totalorder %s28, 0
      %p173 = por %p171, %p172
      %p174 = scmp.ne.s32.totalorder %s160, %s161
      %p175 = scmp.eq.s32.totalorder %s29, 5
      %p176 = por %p174, %p175
      %p178 = scmp.ne.s32.totalorder %s161, %s177
      %p179 = scmp.eq.s32.totalorder %s29, 0
      %p180 = por %p178, %p179
      %p181 = scmp.le.s32.totalorder 1, %s23
      %p182 = scmp.lt.s32.totalorder %s23, 7
      %p183 = pnand %p181, %p182
      %p184 = pneg %p183
      // Predicated region
      $region9: #{tpu_custom_call.1} parent=5 // pred_check
        _
      $region10: #{tpu_custom_call.1} parent=5 // pred_check_branch
        %186 = sbr.rel (%p183) target = $region12
      $region11: #{tpu_custom_call.1} parent=5 // pred_region
        %s187 = ssub.s32 %s23, 1
      $region12: #{tpu_custom_call.1} parent=5 // pred_fallthru
        _
      %p188 = scmp.lt.s32.totalorder %s23, 6
      // Predicated region
      $region13: #{tpu_custom_call.1} parent=5 // pred_check
        %p189 = pneg %p188
      $region14: #{tpu_custom_call.1} parent=5 // pred_check_branch
        %191 = sbr.rel (%p189) target = $region16
      $region15: #{tpu_custom_call.1} parent=5 // pred_region
        // Predicated region
        $region17: #{tpu_custom_call.1} parent=15 // pred_check
          %p192 = pneg %p55
        $region18: #{tpu_custom_call.1} parent=15 // pred_check_branch
          %194 = sbr.rel (%p192) target = $region20
        $region19: #{tpu_custom_call.1} parent=15 // pred_region
          %p195 = scmp.lt.s32.totalorder %s30, 1
          %s196 = scalar_select %p195, %s30, 1
          %s197 = smul.addr %s196, 8
          %s198 = scalar_lea.vmem %s0, %s197
        $region20: #{tpu_custom_call.1} parent=15 // pred_fallthru
          _
        // Predicated region
        $region21: #{tpu_custom_call.1} parent=15 // pred_check
          %p199 = pneg %p83
        $region22: #{tpu_custom_call.1} parent=15 // pred_check_branch
          %201 = sbr.rel (%p199) target = $region24
        $region23: #{tpu_custom_call.1} parent=15 // pred_region
          %s202 = sand.u32 %s73, 1
          %s203 = scalar_lea.sflag [#allocation3], %s202
          %s204 = sand.u32 %s73, 1
          %s205 = smul.addr %s204, 8
          %s206 = scalar_lea.vmem [#allocation2], %s205
          %s208 = ssub.s32 128, 128
          %209 = vsyncadd %s203, %s208
          %s210 = smul.addr %s30, 3
          %s211 = sadd.s32 %s31, %s210
          %s212 = smul.addr %s211, 128
          %s213 = scalar_lea.hbm %s1, %s212
          %s215 = sshll.u32 %s206, 4
          %s216 = int_to_ptr.vmem [resolvable:$true] %s215
          %218 = dma.hbm_to_vmem [thread:$0]  %s213, 128, %s216, %s203
        $region24: #{tpu_custom_call.1} parent=15 // pred_fallthru
          _
        // Predicated region
        $region25: #{tpu_custom_call.1} parent=15 // pred_check
          %p219 = pneg %p111
        $region26: #{tpu_custom_call.1} parent=15 // pred_check_branch
          %221 = sbr.rel (%p219) target = $region28
        $region27: #{tpu_custom_call.1} parent=15 // pred_region
          %s222 = sand.u32 %s101, 1
          %s223 = scalar_lea.sflag [#allocation6], %s222
          %s224 = sand.u32 %s101, 1
          %s225 = smul.addr %s224, 8
          %s226 = scalar_lea.vmem [#allocation5], %s225
          %s228 = ssub.s32 128, 128
          %229 = vsyncadd %s223, %s228
          %s230 = smul.addr %s30, 3
          %s231 = sadd.s32 %s31, %s230
          %s232 = smul.addr %s231, 128
          %s233 = scalar_lea.hbm %s2, %s232
          %s235 = sshll.u32 %s226, 4
          %s236 = int_to_ptr.vmem [resolvable:$true] %s235
          %238 = dma.hbm_to_vmem [thread:$0]  %s233, 128, %s236, %s223
        $region28: #{tpu_custom_call.1} parent=15 // pred_fallthru
          _
      $region16: #{tpu_custom_call.1} parent=5 // pred_fallthru
        _
      %p239 = scmp.le.s32.totalorder 1, %s23
      %p240 = scmp.lt.s32.totalorder %s23, 7
      %p241 = pnand %p239, %p240
      %p242 = pneg %p241
      // Predicated region
      $region29: #{tpu_custom_call.1} parent=5 // pred_check
        _
      $region30: #{tpu_custom_call.1} parent=5 // pred_check_branch
        %244 = sbr.rel (%p241) target = $region32
      $region31: #{tpu_custom_call.1} parent=5 // pred_region
        %s245 = ssub.s32 %s23, 1
        %s246 = sand.u32 %s76, 1
        %s247 = scalar_lea.sflag [#allocation3], %s246
        %s248 = sand.u32 %s76, 1
        %s249 = smul.addr %s248, 8
        %s250 = scalar_lea.vmem [#allocation2], %s249
        // Predicated region
        $region33: #{tpu_custom_call.1} parent=31 // pred_check
          %p251 = pneg %p89
        $region34: #{tpu_custom_call.1} parent=31 // pred_check_branch
          %253 = sbr.rel (%p251) target = $region36
        $region35: #{tpu_custom_call.1} parent=31 // pred_region
          %254 = dma.done %s247, 128
        $region36: #{tpu_custom_call.1} parent=31 // pred_fallthru
          _
        %s255 = sand.u32 %s104, 1
        %s256 = scalar_lea.sflag [#allocation6], %s255
        %s257 = sand.u32 %s104, 1
        %s258 = smul.addr %s257, 8
        %s259 = scalar_lea.vmem [#allocation5], %s258
        // Predicated region
        $region37: #{tpu_custom_call.1} parent=31 // pred_check
          %p260 = pneg %p117
        $region38: #{tpu_custom_call.1} parent=31 // pred_check_branch
          %262 = sbr.rel (%p260) target = $region40
        $region39: #{tpu_custom_call.1} parent=31 // pred_region
          %263 = dma.done %s256, 128
        $region40: #{tpu_custom_call.1} parent=31 // pred_fallthru
          _
        %p264 = scmp.lt.s32.totalorder %s32, 1
        %s265 = scalar_select %p264, %s32, 1
        %s266 = smul.addr %s265, 8
        %s267 = scalar_lea.vmem %s0, %s266
        %p268 = pneg %p61
        %p269 = pneg %p58
        %s270 = sand.u32 %s76, 1
        %s271 = scalar_lea.sflag [#allocation3], %s270
        %s272 = sand.u32 %s76, 1
        %s273 = smul.addr %s272, 8
        %s274 = scalar_lea.vmem [#allocation2], %s273
        %p275 = pneg %p89
        %p276 = pneg %p86
        %s277 = sand.u32 %s104, 1
        %s278 = scalar_lea.sflag [#allocation6], %s277
        %s279 = sand.u32 %s104, 1
        %s280 = smul.addr %s279, 8
        %s281 = scalar_lea.vmem [#allocation5], %s280
        %p282 = pneg %p117
        %p283 = pneg %p114
        %p284 = pneg %p145
        %p285 = pneg %p142
        %s286 = sand.u32 %s132, 1
        %s287 = scalar_lea.sflag [#allocation4], %s286
        %s288 = sand.u32 %s132, 1
        %s289 = smul.addr %s288, 8
        %s290 = scalar_lea.vmem [#allocation7], %s289
        %p291 = pneg %p173
        %p292 = pneg %p170
        %s293 = sand.u32 %s160, 1
        %s294 = scalar_lea.sflag [#allocation9], %s293
        %s295 = sand.u32 %s160, 1
        %s296 = smul.addr %s295, 8
        %s297 = scalar_lea.vmem [#allocation8], %s296
        %p298 = scmp.lt.s32.totalorder %s32, 1
        %s299 = scalar_select %p298, %s32, 1
        %s300 = smul.addr %s299, 8
        %s301 = scalar_lea.vmem %s0, %s300
        %s302 = smul.u32 %s33, 128
        %v303 = vlaneseq
        %v304 = vand.u32 %v303, 127
        %v305 = vstv %s302
        %v306 = vadd.s32 %v304, %v305
        %v307 = vld [vmem:[%s301] sm:$0xff]
        %308 = vset.pattern.permute.xlu0 0
        %309 = vperm.xlu0 %308, %v307
        %v310 = vpop.permute.xlu0 %309
        %vm311 = vcmp.eq.s32.totalorder %v306, %v310
        %v312 = vld [vmem:[%s259] sm:$0xff]
        %v313 = vld [vmem:[%s250] sm:$0xff]
        %v314 = vsel %vm311, %v312, %v313
        %315 = vst [vmem:[%s290] sm:$0xff] %v314
        %v316 = vsel %vm311, 1, 0
        %v317 = vcvt.s32.f32 %v316
        %318 = vst [vmem:[%s297] sm:$0xff] %v317
        %s319 = sand.u32 %s132, 1
        %s320 = scalar_lea.sflag [#allocation4], %s319
        %s321 = sand.u32 %s132, 1
        %s322 = smul.addr %s321, 8
        %s323 = scalar_lea.vmem [#allocation7], %s322
        %s324 = sand.u32 %s160, 1
        %s325 = scalar_lea.sflag [#allocation9], %s324
        %s326 = sand.u32 %s160, 1
        %s327 = smul.addr %s326, 8
        %s328 = scalar_lea.vmem [#allocation8], %s327
        // Predicated region
        $region41: #{tpu_custom_call.1} parent=31 // pred_check
          %p329 = pneg %p142
        $region42: #{tpu_custom_call.1} parent=31 // pred_check_branch
          %331 = sbr.rel (%p329) target = $region44
        $region43: #{tpu_custom_call.1} parent=31 // pred_region
          %s333 = ssub.s32 128, 128
          %334 = vsyncadd %s320, %s333
          %s335 = smul.addr %s32, 3
          %s336 = sadd.s32 %s33, %s335
          %s337 = smul.addr %s336, 128
          %s338 = scalar_lea.hbm %s3, %s337
          %s340 = sshll.u32 %s323, 4
          %s341 = int_to_ptr.vmem [resolvable:$true] %s340
          %343 = dma.vmem_to_hbm [thread:$0]  %s341, 128, %s338, %s320
        $region44: #{tpu_custom_call.1} parent=31 // pred_fallthru
          _
        // Predicated region
        $region45: #{tpu_custom_call.1} parent=31 // pred_check
          %p344 = pneg %p170
        $region46: #{tpu_custom_call.1} parent=31 // pred_check_branch
          %346 = sbr.rel (%p344) target = $region48
        $region47: #{tpu_custom_call.1} parent=31 // pred_region
          %s348 = ssub.s32 128, 128
          %349 = vsyncadd %s325, %s348
          %s350 = smul.addr %s32, 3
          %s351 = sadd.s32 %s33, %s350
          %s352 = smul.addr %s351, 128
          %s353 = scalar_lea.hbm %s4, %s352
          %s355 = sshll.u32 %s328, 4
          %s356 = int_to_ptr.vmem [resolvable:$true] %s355
          %358 = dma.vmem_to_hbm [thread:$0]  %s356, 128, %s353, %s325
        $region48: #{tpu_custom_call.1} parent=31 // pred_fallthru
          _
      $region32: #{tpu_custom_call.1} parent=5 // pred_fallthru
        _
      %p359 = scmp.le.s32.totalorder 2, %s23
      // Predicated region
      $region49: #{tpu_custom_call.1} parent=5 // pred_check
        %p360 = pneg %p359
      $region50: #{tpu_custom_call.1} parent=5 // pred_check_branch
        %362 = sbr.rel (%p360) target = $region52
      $region51: #{tpu_custom_call.1} parent=5 // pred_region
        %s363 = ssub.s32 %s23, 2
        // Predicated region
        $region53: #{tpu_custom_call.1} parent=51 // pred_check
          %p364 = pneg %p148
        $region54: #{tpu_custom_call.1} parent=51 // pred_check_branch
          %366 = sbr.rel (%p364) target = $region56
        $region55: #{tpu_custom_call.1} parent=51 // pred_region
          %s367 = sand.u32 %s133, 1
          %s368 = scalar_lea.sflag [#allocation4], %s367
          %s369 = sand.u32 %s133, 1
          %s370 = smul.addr %s369, 8
          %s371 = scalar_lea.vmem [#allocation7], %s370
          %372 = dma.done %s368, 128
        $region56: #{tpu_custom_call.1} parent=51 // pred_fallthru
          _
        // Predicated region
        $region57: #{tpu_custom_call.1} parent=51 // pred_check
          %p373 = pneg %p176
        $region58: #{tpu_custom_call.1} parent=51 // pred_check_branch
          %375 = sbr.rel (%p373) target = $region60
        $region59: #{tpu_custom_call.1} parent=51 // pred_region
          %s376 = sand.u32 %s161, 1
          %s377 = scalar_lea.sflag [#allocation9], %s376
          %s378 = sand.u32 %s161, 1
          %s379 = smul.addr %s378, 8
          %s380 = scalar_lea.vmem [#allocation8], %s379
          %381 = dma.done %s377, 128
        $region60: #{tpu_custom_call.1} parent=51 // pred_fallthru
          _
      $region52: #{tpu_custom_call.1} parent=5 // pred_fallthru
        _
    $region6: #{tpu_custom_call.1} parent=1 // loop_footer
      %s27 = sadd.s32 1, %s23
    $region7: #{tpu_custom_call.1} parent=1 // loop_footer_branch
      %22 = sbr.rel target = $region3
    $region8: #{tpu_custom_call.1} parent=1 // loop_exit
      _
    %382 = vsyncpa [#allocation3], 1
    %s383 = scalar_lea.sflag [#allocation3], 1
    %384 = vsyncpa %s383, 1
    %385 = vsyncpa [#allocation6], 1
    %s386 = scalar_lea.sflag [#allocation6], 1
    %387 = vsyncpa %s386, 1
    %388 = vsyncpa [#allocation4], 1
    %s389 = scalar_lea.sflag [#allocation4], 1
    %390 = vsyncpa %s389, 1
    %391 = vsyncpa [#allocation9], 1
    %s392 = scalar_lea.sflag [#allocation9], 1
    %393 = vsyncpa %s392, 1

</llo_original>
